<compile_context>
chip_gen: v7x
topology: tpu7x:2x2x1
jax: 0.10.0
libtpu: 0.0.40
codegen_flags: <defaults>
</compile_context>

<pallas_src>
import jax
import jax.numpy as jnp
from jax.experimental import pallas as pl
from jax.experimental.pallas import tpu as pltpu

LAMBDA_COORD = 5.0
LAMBDA_OBJ = 1.0
LAMBDA_NOOBJ = 0.5
LANE = 128


def _round_up(x, m):
    return (x + m - 1) // m * m


def _make_kernel(n_valid, tile_n, num_classes, lambda_obj, lambda_noobj):
    """Build the fused loss kernel for one row-tile of `tile_n` logical rows."""
    rc = tile_n // LANE  # sublane-rows per tile for the lane-dense conf blocks

    def kernel(pa_ref, la_ref, pc_ref, lc_ref, rel_ref, lab_ref, out_ref):
        t = pl.program_id(0)
        base = t * tile_n

        # ---- location loss: sum of squared error (zero padding is exact) ----
        d = pa_ref[...].astype(jnp.float32) - la_ref[...].astype(jnp.float32)
        loc_p = jnp.sum(d * d)

        # ---- confidence loss: fused weighted BCE-with-logits sum ------------
        x = pc_ref[...].astype(jnp.float32)
        y = lc_ref[...].astype(jnp.float32)
        # numerically stable: max(x,0) - x*y + log1p(exp(-|x|))
        bce = jnp.maximum(x, 0.0) - x * y + jnp.log1p(jnp.exp(-jnp.abs(x)))
        flat = (jax.lax.broadcasted_iota(jnp.int32, (rc, LANE), 0) * LANE
                + jax.lax.broadcasted_iota(jnp.int32, (rc, LANE), 1))
        valid_c = (base + flat) < n_valid
        # one select + one reduction instead of two masked reductions
        w = jnp.where(valid_c,
                      jnp.where(y != 0.0, lambda_obj, lambda_noobj),
                      0.0)
        conf_p = jnp.sum(bce * w)

        # ---- classification loss: sum of per-row CE (mean taken outside) ----
        logits = rel_ref[...].astype(jnp.float32)          # (tile_n, C)
        m = jnp.max(logits, axis=-1, keepdims=True)
        lse = m + jnp.log(jnp.sum(jnp.exp(logits - m), axis=-1, keepdims=True))
        class_ids = jax.lax.broadcasted_iota(jnp.int32, (tile_n, num_classes), 1)
        onehot = (class_ids == lab_ref[...]).astype(jnp.float32)
        true_logit = jnp.sum(onehot * logits, axis=-1, keepdims=True)
        rows = jax.lax.broadcasted_iota(jnp.int32, (tile_n, 1), 0)
        valid_r = (base + rows) < n_valid
        ce_p = jnp.sum(jnp.where(valid_r, lse - true_logit, 0.0))

        # ---- pack partial sums into lanes 0/1/2 of a lane-dense block -------
        lane = jax.lax.broadcasted_iota(jnp.int32, (8, LANE), 1)
        row0 = jax.lax.broadcasted_iota(jnp.int32, (8, LANE), 0) == 0
        blk = (jnp.where(row0 & (lane == 0), loc_p, 0.0)
               + jnp.where(row0 & (lane == 1), conf_p, 0.0)
               + jnp.where(row0 & (lane == 2), ce_p, 0.0))
        out_ref[0] = blk

    return kernel


def loss_fn(predict_anchor, label_anchor, predict_conf, label_conf,
            predict_relation, label_relations,
            lambda_coord=LAMBDA_COORD, lambda_obj=LAMBDA_OBJ,
            lambda_noobj=LAMBDA_NOOBJ, tile_rows=2048):
    """Fused loss; matches LossFn.forward of the PyTorch module."""
    assert tile_rows % 1024 == 0, "tile_rows must be a multiple of 1024"

    A = predict_anchor.shape[-1]
    C = predict_relation.shape[-1]
    N = 1
    for d in predict_anchor.shape[:-1]:
        N *= d

    # native dtype is preserved; upcast happens inside the kernel
    pa = predict_anchor.reshape(N * A)
    la = label_anchor.reshape(N * A)
    pc = predict_conf.reshape(N)
    lc = label_conf.reshape(N)
    rel = predict_relation.reshape(N, C)
    lab = label_relations.reshape(N).astype(jnp.int32)

    # single tile if everything fits, else tiles of `tile_rows` rows
    tile_n = tile_rows if N > tile_rows else _round_up(N, LANE)
    n_pad = _round_up(N, tile_n)
    num_tiles = n_pad // tile_n

    def pad1(x, n):
        return jnp.pad(x, (0, n - x.shape[0])) if n != x.shape[0] else x

    def pad2(x, n):
        return jnp.pad(x, ((0, n - x.shape[0]), (0, 0))) if n != x.shape[0] else x

    # lane-dense relayout (zero-padded tails)
    pa2 = pad1(pa, n_pad * A).reshape(n_pad * A // LANE, LANE)
    la2 = pad1(la, n_pad * A).reshape(n_pad * A // LANE, LANE)
    pc2 = pad1(pc, n_pad).reshape(n_pad // LANE, LANE)
    lc2 = pad1(lc, n_pad).reshape(n_pad // LANE, LANE)
    rel2 = pad2(rel, n_pad)                      # (n_pad, C), C on lane axis
    lab2 = pad1(lab, n_pad).reshape(n_pad, 1)    # tiny int32 column

    kernel = _make_kernel(N, tile_n, C, float(lambda_obj), float(lambda_noobj))

    a_rows = tile_n * A // LANE
    c_rows = tile_n // LANE

    in_bytes = sum(int(x.size) * x.dtype.itemsize
                   for x in (pa2, la2, pc2, lc2, rel2, lab2))
    out_bytes = num_tiles * 8 * LANE * 4
    cost = pl.CostEstimate(
        flops=int(n_pad * (4 * A + 12) + n_pad * C * 8),
        transcendentals=int(n_pad * (C + 3)),
        bytes_accessed=int(in_bytes + out_bytes),
    )

    partials = pl.pallas_call(
        kernel,
        out_shape=jax.ShapeDtypeStruct((num_tiles, 8, LANE), jnp.float32),
        grid=(num_tiles,),
        in_specs=[
            pl.BlockSpec((a_rows, LANE), lambda t: (t, 0)),   # predict_anchor
            pl.BlockSpec((a_rows, LANE), lambda t: (t, 0)),   # label_anchor
            pl.BlockSpec((c_rows, LANE), lambda t: (t, 0)),   # predict_conf
            pl.BlockSpec((c_rows, LANE), lambda t: (t, 0)),   # label_conf
            pl.BlockSpec((tile_n, C), lambda t: (t, 0)),      # predict_relation
            pl.BlockSpec((tile_n, 1), lambda t: (t, 0)),      # label_relations
        ],
        out_specs=pl.BlockSpec((1, 8, LANE), lambda t: (t, 0, 0)),
        compiler_params=pltpu.CompilerParams(
            dimension_semantics=("parallel",)),
        cost_estimate=cost,
    )(pa2, la2, pc2, lc2, rel2, lab2)

    per_lane = jnp.sum(partials, axis=(0, 1))   # (128,)
    loc_loss = per_lane[0]
    conf_loss = per_lane[1]                     # already obj/noobj-weighted
    ce_mean = per_lane[2] / N
    return lambda_coord * loc_loss + lambda_obj * conf_loss + ce_mean


def _reference(predict_anchor, label_anchor, predict_conf, label_conf,
               predict_relation, label_relations):
    # pure-JAX reference for a sanity check
    loc = jnp.sum((predict_anchor - label_anchor) ** 2)
    x = predict_conf
    y = label_conf
    bce = jnp.maximum(x, 0.0) - x * y + jnp.log1p(jnp.exp(-jnp.abs(x)))
    obj = jnp.sum(jnp.where(y != 0.0, bce, 0.0))
    noobj = jnp.sum(jnp.where(y != 0.0, 0.0, bce))
    conf = LAMBDA_OBJ * obj + LAMBDA_NOOBJ * noobj
    C = predict_relation.shape[-1]
    logits = predict_relation.reshape(-1, C)
    labels = label_relations.reshape(-1).astype(jnp.int32)
    logp = jax.nn.log_softmax(logits, axis=-1)
    ce = -jnp.mean(jnp.take_along_axis(logp, labels[:, None], axis=-1))
    return LAMBDA_COORD * loc + LAMBDA_OBJ * conf + ce


def _make_inputs(key, B, S, A, C):
    k1, k2, k3, k4, k5, k6 = jax.random.split(key, 6)
    predict_anchor = jax.random.normal(k1, (B, S, A), dtype=jnp.float32)
    label_anchor = jax.random.normal(k2, (B, S, A), dtype=jnp.float32)
    predict_conf = jax.random.normal(k3, (B, S), dtype=jnp.float32)
    label_conf = jax.random.bernoulli(k4, 0.5, (B, S)).astype(jnp.float32)
    predict_relation = jax.random.normal(k5, (B, S, C), dtype=jnp.float32)
    label_relations = jax.random.randint(k6, (B, S), 0, C, dtype=jnp.int32)
    return (predict_anchor, label_anchor, predict_conf, label_conf,
            predict_relation, label_relations)


if __name__ == "__main__":
    key = jax.random.PRNGKey(0)
    k_small, k_big = jax.random.split(key)

    # ---- small config matching the module (single-tile path) ----
    args = _make_inputs(k_small, B=2, S=8, A=4, C=16)
    total = jax.block_until_ready(loss_fn(*args))
    ref = _reference(*args)
    assert jnp.allclose(total, ref, rtol=1e-4, atol=1e-4), (total, ref)

    # ---- multi-tile path (exercises parallel grid + padding masks) ----
    args2 = _make_inputs(k_big, B=2, S=1500, A=4, C=16)   # N=3000 -> 3 tiles
    total2 = jax.block_until_ready(loss_fn(*args2, tile_rows=1024))
    ref2 = _reference(*args2)
    assert jnp.allclose(total2, ref2, rtol=1e-4, atol=1e-1), (total2, ref2)

    print("KERNEL_OK")
</pallas_src>

<mosaic_0001>
module attributes {stable_mosaic.version = 11 : i64} {
  func.func @kernel(%arg0: i32, %arg1: memref<4x128xf32, #tpu.memory_space<vmem>>, %arg2: memref<4x128xf32, #tpu.memory_space<vmem>>, %arg3: memref<1x128xf32, #tpu.memory_space<vmem>>, %arg4: memref<1x128xf32, #tpu.memory_space<vmem>>, %arg5: memref<128x16xf32, #tpu.memory_space<vmem>>, %arg6: memref<128x1xi32, #tpu.memory_space<vmem>>, %arg7: memref<1x8x128xf32, #tpu.memory_space<vmem>>) attributes {dimension_semantics = [#tpu.dimension_semantics<parallel>], iteration_bounds = array<i64: 1>, scalar_prefetch = 0 : i64, scratch_operands = 0 : i64, tpu.core_type = #tpu.core_type<tc>, window_params = [{transform_indices = @transform_0, window_bounds = array<i64: 4, 128>}, {transform_indices = @transform_1, window_bounds = array<i64: 4, 128>}, {transform_indices = @transform_2, window_bounds = array<i64: 1, 128>}, {transform_indices = @transform_3, window_bounds = array<i64: 1, 128>}, {transform_indices = @transform_4, window_bounds = array<i64: 128, 16>}, {transform_indices = @transform_5, window_bounds = array<i64: 128, 1>}, {transform_indices = @transform_6, window_bounds = array<i64: 1, 8, 128>}]} {
    %c128_i32 = arith.constant 128 : i32
    %0 = arith.muli %arg0, %c128_i32 : i32
    %c0 = arith.constant 0 : index
    %c0_0 = arith.constant 0 : index
    %1 = vector.load %arg1[%c0, %c0_0] : memref<4x128xf32, #tpu.memory_space<vmem>>, vector<4x128xf32>
    %c0_1 = arith.constant 0 : index
    %c0_2 = arith.constant 0 : index
    %2 = vector.load %arg2[%c0_1, %c0_2] : memref<4x128xf32, #tpu.memory_space<vmem>>, vector<4x128xf32>
    %3 = arith.subf %1, %2 : vector<4x128xf32>
    %4 = arith.mulf %3, %3 : vector<4x128xf32>
    %5 = vector.shape_cast %4 : vector<4x128xf32> to vector<1x4x128xf32>
    %cst = arith.constant dense<0.000000e+00> : vector<1xf32>
    %6 = vector.multi_reduction <add>, %5, %cst [1, 2] : vector<1x4x128xf32> to vector<1xf32>
    %7 = vector.shape_cast %6 : vector<1xf32> to vector<1x1x1xf32>
    %8 = vector.extract %7[0, 0, 0] : f32 from vector<1x1x1xf32>
    %c0_3 = arith.constant 0 : index
    %c0_4 = arith.constant 0 : index
    %9 = vector.load %arg3[%c0_3, %c0_4] : memref<1x128xf32, #tpu.memory_space<vmem>>, vector<1x128xf32>
    %c0_5 = arith.constant 0 : index
    %c0_6 = arith.constant 0 : index
    %10 = vector.load %arg4[%c0_5, %c0_6] : memref<1x128xf32, #tpu.memory_space<vmem>>, vector<1x128xf32>
    %cst_7 = arith.constant 0.000000e+00 : f32
    %11 = vector.broadcast %cst_7 : f32 to vector<1x128xf32>
    %12 = arith.maximumf %9, %11 : vector<1x128xf32>
    %13 = arith.mulf %9, %10 : vector<1x128xf32>
    %14 = arith.subf %12, %13 : vector<1x128xf32>
    %15 = math.absf %9 : vector<1x128xf32>
    %cst_8 = arith.constant 0.000000e+00 : f32
    %16 = vector.broadcast %cst_8 : f32 to vector<1x128xf32>
    %17 = arith.subf %16, %15 : vector<1x128xf32>
    %18 = math.exp %17 : vector<1x128xf32>
    %19 = math.log1p %18 : vector<1x128xf32>
    %20 = arith.addf %14, %19 : vector<1x128xf32>
    %21 = tpu.iota {dimensions = array<i32: 0>} : vector<1x128xi32>
    %c128_i32_9 = arith.constant 128 : i32
    %22 = vector.broadcast %c128_i32_9 : i32 to vector<1x128xi32>
    %23 = arith.muli %21, %22 : vector<1x128xi32>
    %24 = tpu.iota {dimensions = array<i32: 1>} : vector<1x128xi32>
    %25 = arith.addi %23, %24 : vector<1x128xi32>
    %26 = vector.broadcast %0 : i32 to vector<1x128xi32>
    %27 = arith.addi %26, %25 : vector<1x128xi32>
    %c16_i32 = arith.constant 16 : i32
    %28 = vector.broadcast %c16_i32 : i32 to vector<1x128xi32>
    %29 = arith.cmpi slt, %27, %28 : vector<1x128xi32>
    %cst_10 = arith.constant 0.000000e+00 : f32
    %30 = vector.broadcast %cst_10 : f32 to vector<1x128xf32>
    %31 = arith.cmpf one, %10, %30 : vector<1x128xf32>
    %cst_11 = arith.constant 1.000000e+00 : f32
    %cst_12 = arith.constant 5.000000e-01 : f32
    %32 = vector.broadcast %cst_11 : f32 to vector<1x128xf32>
    %33 = vector.broadcast %cst_12 : f32 to vector<1x128xf32>
    %34 = arith.select %31, %32, %33 : vector<1x128xi1>, vector<1x128xf32>
    %cst_13 = arith.constant 0.000000e+00 : f32
    %35 = vector.broadcast %cst_13 : f32 to vector<1x128xf32>
    %36 = arith.select %29, %34, %35 : vector<1x128xi1>, vector<1x128xf32>
    %37 = arith.mulf %20, %36 : vector<1x128xf32>
    %38 = vector.shape_cast %37 : vector<1x128xf32> to vector<1x1x128xf32>
    %cst_14 = arith.constant dense<0.000000e+00> : vector<1xf32>
    %39 = vector.multi_reduction <add>, %38, %cst_14 [1, 2] : vector<1x1x128xf32> to vector<1xf32>
    %40 = vector.shape_cast %39 : vector<1xf32> to vector<1x1x1xf32>
    %41 = vector.extract %40[0, 0, 0] : f32 from vector<1x1x1xf32>
    %c0_15 = arith.constant 0 : index
    %c0_16 = arith.constant 0 : index
    %42 = vector.load %arg5[%c0_15, %c0_16] : memref<128x16xf32, #tpu.memory_space<vmem>>, vector<128x16xf32>
    %cst_17 = arith.constant dense<0xFF800000> : vector<128xf32>
    %43 = vector.multi_reduction <maximumf>, %42, %cst_17 [1] : vector<128x16xf32> to vector<128xf32>
    %44 = vector.shape_cast %43 : vector<128xf32> to vector<128x1xf32>
    %45 = vector.broadcast %44 : vector<128x1xf32> to vector<128x16xf32>
    %46 = arith.subf %42, %45 : vector<128x16xf32>
    %47 = math.exp %46 : vector<128x16xf32>
    %cst_18 = arith.constant dense<0.000000e+00> : vector<128xf32>
    %48 = vector.multi_reduction <add>, %47, %cst_18 [1] : vector<128x16xf32> to vector<128xf32>
    %49 = vector.shape_cast %48 : vector<128xf32> to vector<128x1xf32>
    %50 = math.log %49 : vector<128x1xf32>
    %51 = arith.addf %44, %50 : vector<128x1xf32>
    %52 = tpu.iota {dimensions = array<i32: 1>} : vector<128x16xi32>
    %c0_19 = arith.constant 0 : index
    %c0_20 = arith.constant 0 : index
    %53 = vector.load %arg6[%c0_19, %c0_20] : memref<128x1xi32, #tpu.memory_space<vmem>>, vector<128x1xi32>
    %54 = vector.broadcast %53 : vector<128x1xi32> to vector<128x16xi32>
    %55 = arith.cmpi eq, %52, %54 : vector<128x16xi32>
    %56 = arith.extui %55 : vector<128x16xi1> to vector<128x16xi32>
    %57 = arith.sitofp %56 : vector<128x16xi32> to vector<128x16xf32>
    %58 = arith.mulf %57, %42 : vector<128x16xf32>
    %cst_21 = arith.constant dense<0.000000e+00> : vector<128xf32>
    %59 = vector.multi_reduction <add>, %58, %cst_21 [1] : vector<128x16xf32> to vector<128xf32>
    %60 = vector.shape_cast %59 : vector<128xf32> to vector<128x1xf32>
    %61 = tpu.iota {dimensions = array<i32: 0>} : vector<128x1xi32>
    %62 = vector.broadcast %0 : i32 to vector<128x1xi32>
    %63 = arith.addi %62, %61 : vector<128x1xi32>
    %c16_i32_22 = arith.constant 16 : i32
    %64 = vector.broadcast %c16_i32_22 : i32 to vector<128x1xi32>
    %65 = arith.cmpi slt, %63, %64 : vector<128x1xi32>
    %66 = arith.subf %51, %60 : vector<128x1xf32>
    %cst_23 = arith.constant 0.000000e+00 : f32
    %67 = vector.broadcast %cst_23 : f32 to vector<128x1xf32>
    %68 = arith.select %65, %66, %67 : vector<128x1xi1>, vector<128x1xf32>
    %69 = vector.shape_cast %68 : vector<128x1xf32> to vector<1x128x1xf32>
    %cst_24 = arith.constant dense<0.000000e+00> : vector<1xf32>
    %70 = vector.multi_reduction <add>, %69, %cst_24 [1, 2] : vector<1x128x1xf32> to vector<1xf32>
    %71 = vector.shape_cast %70 : vector<1xf32> to vector<1x1x1xf32>
    %72 = vector.extract %71[0, 0, 0] : f32 from vector<1x1x1xf32>
    %73 = tpu.iota {dimensions = array<i32: 1>} : vector<8x128xi32>
    %74 = tpu.iota {dimensions = array<i32: 0>} : vector<8x128xi32>
    %c0_i32 = arith.constant 0 : i32
    %75 = vector.broadcast %c0_i32 : i32 to vector<8x128xi32>
    %76 = arith.cmpi eq, %74, %75 : vector<8x128xi32>
    %c0_i32_25 = arith.constant 0 : i32
    %77 = vector.broadcast %c0_i32_25 : i32 to vector<8x128xi32>
    %78 = arith.cmpi eq, %73, %77 : vector<8x128xi32>
    %79 = arith.andi %76, %78 : vector<8x128xi1>
    %cst_26 = arith.constant 0.000000e+00 : f32
    %80 = vector.broadcast %8 : f32 to vector<8x128xf32>
    %81 = vector.broadcast %cst_26 : f32 to vector<8x128xf32>
    %82 = arith.select %79, %80, %81 : vector<8x128xi1>, vector<8x128xf32>
    %c1_i32 = arith.constant 1 : i32
    %83 = vector.broadcast %c1_i32 : i32 to vector<8x128xi32>
    %84 = arith.cmpi eq, %73, %83 : vector<8x128xi32>
    %85 = arith.andi %76, %84 : vector<8x128xi1>
    %cst_27 = arith.constant 0.000000e+00 : f32
    %86 = vector.broadcast %41 : f32 to vector<8x128xf32>
    %87 = vector.broadcast %cst_27 : f32 to vector<8x128xf32>
    %88 = arith.select %85, %86, %87 : vector<8x128xi1>, vector<8x128xf32>
    %89 = arith.addf %82, %88 : vector<8x128xf32>
    %c2_i32 = arith.constant 2 : i32
    %90 = vector.broadcast %c2_i32 : i32 to vector<8x128xi32>
    %91 = arith.cmpi eq, %73, %90 : vector<8x128xi32>
    %92 = arith.andi %76, %91 : vector<8x128xi1>
    %cst_28 = arith.constant 0.000000e+00 : f32
    %93 = vector.broadcast %72 : f32 to vector<8x128xf32>
    %94 = vector.broadcast %cst_28 : f32 to vector<8x128xf32>
    %95 = arith.select %92, %93, %94 : vector<8x128xi1>, vector<8x128xf32>
    %96 = arith.addf %89, %95 : vector<8x128xf32>
    %c0_29 = arith.constant 0 : index
    %c0_30 = arith.constant 0 : index
    %c0_31 = arith.constant 0 : index
    %97 = vector.load %arg7[%c0_29, %c0_30, %c0_31] : memref<1x8x128xf32, #tpu.memory_space<vmem>>, vector<1x8x128xf32>
    %98 = vector.shape_cast %97 : vector<1x8x128xf32> to vector<8x128xf32>
    %99 = vector.shape_cast %96 : vector<8x128xf32> to vector<1x8x128xf32>
    tpu.vector_store %arg7[%c0_29, %c0_30, %c0_31], %99 {strides = array<i32>} : memref<1x8x128xf32, #tpu.memory_space<vmem>>, vector<1x8x128xf32>,
    return
  }
  func.func @transform_0(%arg0: i32) -> (i32, i32) {
    %c0_i32 = arith.constant 0 : i32
    %c0_i32_0 = arith.constant 0 : i32
    return %arg0, %c0_i32 : i32, i32
  }
  func.func @transform_1(%arg0: i32) -> (i32, i32) {
    %c0_i32 = arith.constant 0 : i32
    %c0_i32_0 = arith.constant 0 : i32
    return %arg0, %c0_i32 : i32, i32
  }
  func.func @transform_2(%arg0: i32) -> (i32, i32) {
    %c0_i32 = arith.constant 0 : i32
    %c0_i32_0 = arith.constant 0 : i32
    return %arg0, %c0_i32 : i32, i32
  }
  func.func @transform_3(%arg0: i32) -> (i32, i32) {
    %c0_i32 = arith.constant 0 : i32
    %c0_i32_0 = arith.constant 0 : i32
    return %arg0, %c0_i32 : i32, i32
  }
  func.func @transform_4(%arg0: i32) -> (i32, i32) {
    %c0_i32 = arith.constant 0 : i32
    %c0_i32_0 = arith.constant 0 : i32
    return %arg0, %c0_i32 : i32, i32
  }
  func.func @transform_5(%arg0: i32) -> (i32, i32) {
    %c0_i32 = arith.constant 0 : i32
    %c0_i32_0 = arith.constant 0 : i32
    return %arg0, %c0_i32 : i32, i32
  }
  func.func @transform_6(%arg0: i32) -> (i32, i32, i32) {
    %c0_i32 = arith.constant 0 : i32
    %c0_i32_0 = arith.constant 0 : i32
    %c0_i32_1 = arith.constant 0 : i32
    return %arg0, %c0_i32, %c0_i32_0 : i32, i32, i32
  }
}

</mosaic_0001>

<llo_original>
// kernel: tpu_custom_call.1
$region0: #{tpu_custom_call.1}
  #allocation0 [shape = 'u32[]', space=smem, size = 0x4, offset = 0x4, fixed_abs, tag = 'smem constant byte address 0x4 - core index']
  #allocation1 [shape = 'u32[144,128]{1,0:T(1,128)}', space=vmem, size = 0x12000, scoped, tag = 'internal scratch']
  %s0 = inlined_call_operand.vmem [shape: f32[4,128], index: 0, kind: input, shape index: {}]
  %s1 = inlined_call_operand.vmem [shape: f32[4,128], index: 1, kind: input, shape index: {}]
  %s2 = inlined_call_operand.vmem [shape: f32[1,128], index: 2, kind: input, shape index: {}]
  %s3 = inlined_call_operand.vmem [shape: f32[1,128], index: 3, kind: input, shape index: {}]
  %s4 = inlined_call_operand.vmem [shape: f32[128,16], index: 4, kind: input, shape index: {}]
  %s5 = inlined_call_operand.vmem [shape: s32[128,1], index: 5, kind: input, shape index: {}]
  %s6 = inlined_call_operand.hbm [shape: f32[1,8,128], index: 6, kind: output, shape index: {}]
  %s7 = sld [smem:[#allocation0]]
  $region34: #{tpu_custom_call.1} parent=0
    _
  %s9 = ssub.s32 1, %s7
  %s10 = scalar_select 0, %s9, %s7
  $region1: #{tpu_custom_call.1} parent=0
    #allocation2 [shape = 'u8[4096]{0}', space=vmem, size = 0x1000, scoped, tag = 'output window, operand 0, single buffered']
    #allocation3 [shape = 's32[1]{0}', space=sflag, size = 0x4, scoped, tag = 'scoped memory for tpu_custom_call.1']
    %11 = vsyncpa [#allocation3], 0
    // Predicated region
    $region2: #{tpu_custom_call.1} parent=1 // pred_check
      _
    $region3: #{tpu_custom_call.1} parent=1 // pred_check_branch
      %13 = sbr.rel (0) target = $region5
    $region4: #{tpu_custom_call.1} parent=1 // pred_region
      _
    $region5: #{tpu_custom_call.1} parent=1 // pred_fallthru
      _
    // Predicated region
    $region6: #{tpu_custom_call.1} parent=1 // pred_check
      _
    $region7: #{tpu_custom_call.1} parent=1 // pred_check_branch
      %15 = sbr.rel (0) target = $region9
    $region8: #{tpu_custom_call.1} parent=1 // pred_region
      _
    $region9: #{tpu_custom_call.1} parent=1 // pred_fallthru
      _
    // Predicated region
    $region10: #{tpu_custom_call.1} parent=1 // pred_check
      _
    $region11: #{tpu_custom_call.1} parent=1 // pred_check_branch
      %17 = sbr.rel (0) target = $region13
    $region12: #{tpu_custom_call.1} parent=1 // pred_region
      _
    $region13: #{tpu_custom_call.1} parent=1 // pred_fallthru
      _
    // Predicated region
    $region14: #{tpu_custom_call.1} parent=1 // pred_check
      _
    $region15: #{tpu_custom_call.1} parent=1 // pred_check_branch
      %19 = sbr.rel (0) target = $region17
    $region16: #{tpu_custom_call.1} parent=1 // pred_region
      _
    $region17: #{tpu_custom_call.1} parent=1 // pred_fallthru
      _
    // Predicated region
    $region18: #{tpu_custom_call.1} parent=1 // pred_check
      _
    $region19: #{tpu_custom_call.1} parent=1 // pred_check_branch
      %21 = sbr.rel (0) target = $region21
    $region20: #{tpu_custom_call.1} parent=1 // pred_region
      _
    $region21: #{tpu_custom_call.1} parent=1 // pred_fallthru
      _
    // Predicated region
    $region22: #{tpu_custom_call.1} parent=1 // pred_check
      _
    $region23: #{tpu_custom_call.1} parent=1 // pred_check_branch
      %23 = sbr.rel (0) target = $region25
    $region24: #{tpu_custom_call.1} parent=1 // pred_region
      _
    $region25: #{tpu_custom_call.1} parent=1 // pred_fallthru
      _
    %s24 = smul.u32 0, 128
    %v25 = vld [vmem:[%s0] sm:$0xf]
    %v26 = vld [vmem:[%s1] sm:$0xf]
    %v27 = vsub.f32 %v25, %v26
    %v28 = vmul.f32 %v27, %v27
    %vm29 = vcmask 1043456
    %v30 = vsel %vm29, %v28, 0.0
    %31 = vadd.xlane.f32.xlu0 %v30
    %v32 = vpop.xlane.xlu0 %31
    %v33 = vrot.slane %v32, 4
    %v34 = vadd.f32 %v32, %v33
    %v35 = vrot.slane %v34, 2
    %v36 = vadd.f32 %v34, %v35
    %v37 = vrot.slane %v36, 1
    %v38 = vadd.f32 %v36, %v37
    %s39 = vtos %v38
    %v40 = vld [vmem:[%s2] sm:$0x1]
    %v41 = vld [vmem:[%s3] sm:$0x1]
    %v42 = vmax.f32 %v40, 0.0
    %v43 = vmul.f32 %v40, %v41
    %v44 = vsub.f32 %v42, %v43
    %v45 = vand.u32 2147483647, %v40
    %v46 = vsub.f32 0.0, %v45
    %v47 = vmul.f32 %v46, 1.442695
    %v48 = vpow.pop %v47
    %v49 = vadd.f32 %v48, 1.0
    %v50 = vlog2.pop %v49
    %v51 = vmul.f32 %v50, 0.6931472
    %v52 = vmul.f32 -0.5, %v48
    %v53 = vadd.f32 %v52, 1.0
    %v54 = vmul.f32 %v53, %v48
    %v55 = vand.u32 2147483647, %v48
    %vm56 = vcmp.lt.f32.partialorder %v55, 0.0004427343
    %v57 = vsel %vm56, %v54, %v51
    %v58 = vadd.f32 %v44, %v57
    %v59 = vlaneseq
    %v60 = vshrl.u32 %v59, 7
    %v61 = vmul.u32 %v60, 128
    %v62 = vlaneseq
    %v63 = vand.u32 %v62, 127
    %v64 = vadd.s32 %v61, %v63
    %v65 = vstv %s24
    %v66 = vadd.s32 %v65, %v64
    %vm67 = vcmp.lt.s32.totalorder %v66, 16
    %vm68 = vcmp.ne.f32.partialorder %v41, 0.0
    %v69 = vsel %vm68, 1.0, 0.5
    %v70 = vsel %vm67, %v69, 0.0
    %v71 = vmul.f32 %v58, %v70
    %vm72 = vcmask 1040384
    %v73 = vsel %vm72, %v71, 0.0
    %74 = vadd.xlane.f32.xlu0 %v73
    %v75 = vpop.xlane.xlu0 %74
    %v76 = vrot.slane %v75, 4
    %v77 = vadd.f32 %v75, %v76
    %v78 = vrot.slane %v77, 2
    %v79 = vadd.f32 %v77, %v78
    %v80 = vrot.slane %v79, 1
    %v81 = vadd.f32 %v79, %v80
    %s82 = vtos %v81
    %v83 = vld [vmem:[%s4] sm:$0xff]
    %v84 = vld [vmem:[%s4 + $0x8] sm:$0xff]
    %v85 = vld [vmem:[%s4 + $0x10] sm:$0xff]
    %v86 = vld [vmem:[%s4 + $0x18] sm:$0xff]
    %v87 = vld [vmem:[%s4 + $0x20] sm:$0xff]
    %v88 = vld [vmem:[%s4 + $0x28] sm:$0xff]
    %v89 = vld [vmem:[%s4 + $0x30] sm:$0xff]
    %v90 = vld [vmem:[%s4 + $0x38] sm:$0xff]
    %v91 = vld [vmem:[%s4 + $0x40] sm:$0xff]
    %v92 = vld [vmem:[%s4 + $0x48] sm:$0xff]
    %v93 = vld [vmem:[%s4 + $0x50] sm:$0xff]
    %v94 = vld [vmem:[%s4 + $0x58] sm:$0xff]
    %v95 = vld [vmem:[%s4 + $0x60] sm:$0xff]
    %v96 = vld [vmem:[%s4 + $0x68] sm:$0xff]
    %v97 = vld [vmem:[%s4 + $0x70] sm:$0xff]
    %v98 = vld [vmem:[%s4 + $0x78] sm:$0xff]
    %vm99 = vcmask 130048
    %v100 = vsel %vm99, %v83, -inf
    %101 = vmax.xlane.f32.xlu0 %v100
    %v102 = vpop.xlane.xlu0 %101
    %v103 = vsel %vm99, %v84, -inf
    %104 = vmax.xlane.f32.xlu0 %v103
    %v105 = vpop.xlane.xlu0 %104
    %v106 = vsel %vm99, %v85, -inf
    %107 = vmax.xlane.f32.xlu0 %v106
    %v108 = vpop.xlane.xlu0 %107
    %v109 = vsel %vm99, %v86, -inf
    %110 = vmax.xlane.f32.xlu0 %v109
    %v111 = vpop.xlane.xlu0 %110
    %v112 = vsel %vm99, %v87, -inf
    %113 = vmax.xlane.f32.xlu0 %v112
    %v114 = vpop.xlane.xlu0 %113
    %v115 = vsel %vm99, %v88, -inf
    %116 = vmax.xlane.f32.xlu0 %v115
    %v117 = vpop.xlane.xlu0 %116
    %v118 = vsel %vm99, %v89, -inf
    %119 = vmax.xlane.f32.xlu0 %v118
    %v120 = vpop.xlane.xlu0 %119
    %v121 = vsel %vm99, %v90, -inf
    %122 = vmax.xlane.f32.xlu0 %v121
    %v123 = vpop.xlane.xlu0 %122
    %v124 = vsel %vm99, %v91, -inf
    %125 = vmax.xlane.f32.xlu0 %v124
    %v126 = vpop.xlane.xlu0 %125
    %v127 = vsel %vm99, %v92, -inf
    %128 = vmax.xlane.f32.xlu0 %v127
    %v129 = vpop.xlane.xlu0 %128
    %v130 = vsel %vm99, %v93, -inf
    %131 = vmax.xlane.f32.xlu0 %v130
    %v132 = vpop.xlane.xlu0 %131
    %v133 = vsel %vm99, %v94, -inf
    %134 = vmax.xlane.f32.xlu0 %v133
    %v135 = vpop.xlane.xlu0 %134
    %v136 = vsel %vm99, %v95, -inf
    %137 = vmax.xlane.f32.xlu0 %v136
    %v138 = vpop.xlane.xlu0 %137
    %v139 = vsel %vm99, %v96, -inf
    %140 = vmax.xlane.f32.xlu0 %v139
    %v141 = vpop.xlane.xlu0 %140
    %v142 = vsel %vm99, %v97, -inf
    %143 = vmax.xlane.f32.xlu0 %v142
    %v144 = vpop.xlane.xlu0 %143
    %v145 = vsel %vm99, %v98, -inf
    %146 = vmax.xlane.f32.xlu0 %v145
    %v147 = vpop.xlane.xlu0 %146
    %v148 = vsub.f32 %v83, %v102
    %v149 = vsub.f32 %v84, %v105
    %v150 = vsub.f32 %v85, %v108
    %v151 = vsub.f32 %v86, %v111
    %v152 = vsub.f32 %v87, %v114
    %v153 = vsub.f32 %v88, %v117
    %v154 = vsub.f32 %v89, %v120
    %v155 = vsub.f32 %v90, %v123
    %v156 = vsub.f32 %v91, %v126
    %v157 = vsub.f32 %v92, %v129
    %v158 = vsub.f32 %v93, %v132
    %v159 = vsub.f32 %v94, %v135
    %v160 = vsub.f32 %v95, %v138
    %v161 = vsub.f32 %v96, %v141
    %v162 = vsub.f32 %v97, %v144
    %v163 = vsub.f32 %v98, %v147
    %v164 = vmul.f32 %v148, 1.442695
    %v165 = vpow.pop %v164
    %v166 = vmul.f32 %v149, 1.442695
    %v167 = vpow.pop %v166
    %v168 = vmul.f32 %v150, 1.442695
    %v169 = vpow.pop %v168
    %v170 = vmul.f32 %v151, 1.442695
    %v171 = vpow.pop %v170
    %v172 = vmul.f32 %v152, 1.442695
    %v173 = vpow.pop %v172
    %v174 = vmul.f32 %v153, 1.442695
    %v175 = vpow.pop %v174
    %v176 = vmul.f32 %v154, 1.442695
    %v177 = vpow.pop %v176
    %v178 = vmul.f32 %v155, 1.442695
    %v179 = vpow.pop %v178
    %v180 = vmul.f32 %v156, 1.442695
    %v181 = vpow.pop %v180
    %v182 = vmul.f32 %v157, 1.442695
    %v183 = vpow.pop %v182
    %v184 = vmul.f32 %v158, 1.442695
    %v185 = vpow.pop %v184
    %v186 = vmul.f32 %v159, 1.442695
    %v187 = vpow.pop %v186
    %v188 = vmul.f32 %v160, 1.442695
    %v189 = vpow.pop %v188
    %v190 = vmul.f32 %v161, 1.442695
    %v191 = vpow.pop %v190
    %v192 = vmul.f32 %v162, 1.442695
    %v193 = vpow.pop %v192
    %v194 = vmul.f32 %v163, 1.442695
    %v195 = vpow.pop %v194
    %v196 = vsel %vm99, %v165, 0.0
    %197 = vadd.xlane.f32.xlu0 %v196
    %v198 = vpop.xlane.xlu0 %197
    %v199 = vsel %vm99, %v167, 0.0
    %200 = vadd.xlane.f32.xlu0 %v199
    %v201 = vpop.xlane.xlu0 %200
    %v202 = vsel %vm99, %v169, 0.0
    %203 = vadd.xlane.f32.xlu0 %v202
    %v204 = vpop.xlane.xlu0 %203
    %v205 = vsel %vm99, %v171, 0.0
    %206 = vadd.xlane.f32.xlu0 %v205
    %v207 = vpop.xlane.xlu0 %206
    %v208 = vsel %vm99, %v173, 0.0
    %209 = vadd.xlane.f32.xlu0 %v208
    %v210 = vpop.xlane.xlu0 %209
    %v211 = vsel %vm99, %v175, 0.0
    %212 = vadd.xlane.f32.xlu0 %v211
    %v213 = vpop.xlane.xlu0 %212
    %v214 = vsel %vm99, %v177, 0.0
    %215 = vadd.xlane.f32.xlu0 %v214
    %v216 = vpop.xlane.xlu0 %215
    %v217 = vsel %vm99, %v179, 0.0
    %218 = vadd.xlane.f32.xlu0 %v217
    %v219 = vpop.xlane.xlu0 %218
    %v220 = vsel %vm99, %v181, 0.0
    %221 = vadd.xlane.f32.xlu0 %v220
    %v222 = vpop.xlane.xlu0 %221
    %v223 = vsel %vm99, %v183, 0.0
    %224 = vadd.xlane.f32.xlu0 %v223
    %v225 = vpop.xlane.xlu0 %224
    %v226 = vsel %vm99, %v185, 0.0
    %227 = vadd.xlane.f32.xlu0 %v226
    %v228 = vpop.xlane.xlu0 %227
    %v229 = vsel %vm99, %v187, 0.0
    %230 = vadd.xlane.f32.xlu0 %v229
    %v231 = vpop.xlane.xlu0 %230
    %v232 = vsel %vm99, %v189, 0.0
    %233 = vadd.xlane.f32.xlu0 %v232
    %v234 = vpop.xlane.xlu0 %233
    %v235 = vsel %vm99, %v191, 0.0
    %236 = vadd.xlane.f32.xlu0 %v235
    %v237 = vpop.xlane.xlu0 %236
    %v238 = vsel %vm99, %v193, 0.0
    %239 = vadd.xlane.f32.xlu0 %v238
    %v240 = vpop.xlane.xlu0 %239
    %v241 = vsel %vm99, %v195, 0.0
    %242 = vadd.xlane.f32.xlu0 %v241
    %v243 = vpop.xlane.xlu0 %242
    %v244 = vlog2.pop %v198
    %v245 = vmul.f32 %v244, 0.6931472
    %v246 = vlog2.pop %v201
    %v247 = vmul.f32 %v246, 0.6931472
    %v248 = vlog2.pop %v204
    %v249 = vmul.f32 %v248, 0.6931472
    %v250 = vlog2.pop %v207
    %v251 = vmul.f32 %v250, 0.6931472
    %v252 = vlog2.pop %v210
    %v253 = vmul.f32 %v252, 0.6931472
    %v254 = vlog2.pop %v213
    %v255 = vmul.f32 %v254, 0.6931472
    %v256 = vlog2.pop %v216
    %v257 = vmul.f32 %v256, 0.6931472
    %v258 = vlog2.pop %v219
    %v259 = vmul.f32 %v258, 0.6931472
    %v260 = vlog2.pop %v222
    %v261 = vmul.f32 %v260, 0.6931472
    %v262 = vlog2.pop %v225
    %v263 = vmul.f32 %v262, 0.6931472
    %v264 = vlog2.pop %v228
    %v265 = vmul.f32 %v264, 0.6931472
    %v266 = vlog2.pop %v231
    %v267 = vmul.f32 %v266, 0.6931472
    %v268 = vlog2.pop %v234
    %v269 = vmul.f32 %v268, 0.6931472
    %v270 = vlog2.pop %v237
    %v271 = vmul.f32 %v270, 0.6931472
    %v272 = vlog2.pop %v240
    %v273 = vmul.f32 %v272, 0.6931472
    %v274 = vlog2.pop %v243
    %v275 = vmul.f32 %v274, 0.6931472
    %v276 = vadd.f32 %v102, %v245
    %v277 = vadd.f32 %v105, %v247
    %v278 = vadd.f32 %v108, %v249
    %v279 = vadd.f32 %v111, %v251
    %v280 = vadd.f32 %v114, %v253
    %v281 = vadd.f32 %v117, %v255
    %v282 = vadd.f32 %v120, %v257
    %v283 = vadd.f32 %v123, %v259
    %v284 = vadd.f32 %v126, %v261
    %v285 = vadd.f32 %v129, %v263
    %v286 = vadd.f32 %v132, %v265
    %v287 = vadd.f32 %v135, %v267
    %v288 = vadd.f32 %v138, %v269
    %v289 = vadd.f32 %v141, %v271
    %v290 = vadd.f32 %v144, %v273
    %v291 = vadd.f32 %v147, %v275
    %v292 = vld [vmem:[%s5] sm:$0xff]
    %v293 = vld [vmem:[%s5 + $0x8] sm:$0xff]
    %v294 = vld [vmem:[%s5 + $0x10] sm:$0xff]
    %v295 = vld [vmem:[%s5 + $0x18] sm:$0xff]
    %v296 = vld [vmem:[%s5 + $0x20] sm:$0xff]
    %v297 = vld [vmem:[%s5 + $0x28] sm:$0xff]
    %v298 = vld [vmem:[%s5 + $0x30] sm:$0xff]
    %v299 = vld [vmem:[%s5 + $0x38] sm:$0xff]
    %v300 = vld [vmem:[%s5 + $0x40] sm:$0xff]
    %v301 = vld [vmem:[%s5 + $0x48] sm:$0xff]
    %v302 = vld [vmem:[%s5 + $0x50] sm:$0xff]
    %v303 = vld [vmem:[%s5 + $0x58] sm:$0xff]
    %v304 = vld [vmem:[%s5 + $0x60] sm:$0xff]
    %v305 = vld [vmem:[%s5 + $0x68] sm:$0xff]
    %v306 = vld [vmem:[%s5 + $0x70] sm:$0xff]
    %v307 = vld [vmem:[%s5 + $0x78] sm:$0xff]
    %308 = vset.pattern.permute.xlu0 0
    %309 = vperm.xlu0 %308, %v292
    %v310 = vpop.permute.xlu0 %309
    %311 = vset.pattern.permute.xlu0 0
    %312 = vperm.xlu0 %311, %v293
    %v313 = vpop.permute.xlu0 %312
    %314 = vset.pattern.permute.xlu0 0
    %315 = vperm.xlu0 %314, %v294
    %v316 = vpop.permute.xlu0 %315
    %317 = vset.pattern.permute.xlu0 0
    %318 = vperm.xlu0 %317, %v295
    %v319 = vpop.permute.xlu0 %318
    %320 = vset.pattern.permute.xlu0 0
    %321 = vperm.xlu0 %320, %v296
    %v322 = vpop.permute.xlu0 %321
    %323 = vset.pattern.permute.xlu0 0
    %324 = vperm.xlu0 %323, %v297
    %v325 = vpop.permute.xlu0 %324
    %326 = vset.pattern.permute.xlu0 0
    %327 = vperm.xlu0 %326, %v298
    %v328 = vpop.permute.xlu0 %327
    %329 = vset.pattern.permute.xlu0 0
    %330 = vperm.xlu0 %329, %v299
    %v331 = vpop.permute.xlu0 %330
    %332 = vset.pattern.permute.xlu0 0
    %333 = vperm.xlu0 %332, %v300
    %v334 = vpop.permute.xlu0 %333
    %335 = vset.pattern.permute.xlu0 0
    %336 = vperm.xlu0 %335, %v301
    %v337 = vpop.permute.xlu0 %336
    %338 = vset.pattern.permute.xlu0 0
    %339 = vperm.xlu0 %338, %v302
    %v340 = vpop.permute.xlu0 %339
    %341 = vset.pattern.permute.xlu0 0
    %342 = vperm.xlu0 %341, %v303
    %v343 = vpop.permute.xlu0 %342
    %344 = vset.pattern.permute.xlu0 0
    %345 = vperm.xlu0 %344, %v304
    %v346 = vpop.permute.xlu0 %345
    %347 = vset.pattern.permute.xlu0 0
    %348 = vperm.xlu0 %347, %v305
    %v349 = vpop.permute.xlu0 %348
    %350 = vset.pattern.permute.xlu0 0
    %351 = vperm.xlu0 %350, %v306
    %v352 = vpop.permute.xlu0 %351
    %353 = vset.pattern.permute.xlu0 0
    %354 = vperm.xlu0 %353, %v307
    %v355 = vpop.permute.xlu0 %354
    %vm356 = vcmp.eq.s32.totalorder %v63, %v310
    %vm357 = vcmp.eq.s32.totalorder %v63, %v313
    %vm358 = vcmp.eq.s32.totalorder %v63, %v316
    %vm359 = vcmp.eq.s32.totalorder %v63, %v319
    %vm360 = vcmp.eq.s32.totalorder %v63, %v322
    %vm361 = vcmp.eq.s32.totalorder %v63, %v325
    %vm362 = vcmp.eq.s32.totalorder %v63, %v328
    %vm363 = vcmp.eq.s32.totalorder %v63, %v331
    %vm364 = vcmp.eq.s32.totalorder %v63, %v334
    %vm365 = vcmp.eq.s32.totalorder %v63, %v337
    %vm366 = vcmp.eq.s32.totalorder %v63, %v340
    %vm367 = vcmp.eq.s32.totalorder %v63, %v343
    %vm368 = vcmp.eq.s32.totalorder %v63, %v346
    %vm369 = vcmp.eq.s32.totalorder %v63, %v349
    %vm370 = vcmp.eq.s32.totalorder %v63, %v352
    %vm371 = vcmp.eq.s32.totalorder %v63, %v355
    %v372 = vsel %vm356, 1, 0
    %v373 = vsel %vm357, 1, 0
    %v374 = vsel %vm358, 1, 0
    %v375 = vsel %vm359, 1, 0
    %v376 = vsel %vm360, 1, 0
    %v377 = vsel %vm361, 1, 0
    %v378 = vsel %vm362, 1, 0
    %v379 = vsel %vm363, 1, 0
    %v380 = vsel %vm364, 1, 0
    %v381 = vsel %vm365, 1, 0
    %v382 = vsel %vm366, 1, 0
    %v383 = vsel %vm367, 1, 0
    %v384 = vsel %vm368, 1, 0
    %v385 = vsel %vm369, 1, 0
    %v386 = vsel %vm370, 1, 0
    %v387 = vsel %vm371, 1, 0
    %v388 = vcvt.s32.f32 %v372
    %v389 = vcvt.s32.f32 %v373
    %v390 = vcvt.s32.f32 %v374
    %v391 = vcvt.s32.f32 %v375
    %v392 = vcvt.s32.f32 %v376
    %v393 = vcvt.s32.f32 %v377
    %v394 = vcvt.s32.f32 %v378
    %v395 = vcvt.s32.f32 %v379
    %v396 = vcvt.s32.f32 %v380
    %v397 = vcvt.s32.f32 %v381
    %v398 = vcvt.s32.f32 %v382
    %v399 = vcvt.s32.f32 %v383
    %v400 = vcvt.s32.f32 %v384
    %v401 = vcvt.s32.f32 %v385
    %v402 = vcvt.s32.f32 %v386
    %v403 = vcvt.s32.f32 %v387
    %v404 = vmul.f32 %v388, %v83
    %v405 = vmul.f32 %v389, %v84
    %v406 = vmul.f32 %v390, %v85
    %v407 = vmul.f32 %v391, %v86
    %v408 = vmul.f32 %v392, %v87
    %v409 = vmul.f32 %v393, %v88
    %v410 = vmul.f32 %v394, %v89
    %v411 = vmul.f32 %v395, %v90
    %v412 = vmul.f32 %v396, %v91
    %v413 = vmul.f32 %v397, %v92
    %v414 = vmul.f32 %v398, %v93
    %v415 = vmul.f32 %v399, %v94
    %v416 = vmul.f32 %v400, %v95
    %v417 = vmul.f32 %v401, %v96
    %v418 = vmul.f32 %v402, %v97
    %v419 = vmul.f32 %v403, %v98
    %v420 = vsel %vm99, %v404, 0.0
    %421 = vadd.xlane.f32.xlu0 %v420
    %v422 = vpop.xlane.xlu0 %421
    %v423 = vsel %vm99, %v405, 0.0
    %424 = vadd.xlane.f32.xlu0 %v423
    %v425 = vpop.xlane.xlu0 %424
    %v426 = vsel %vm99, %v406, 0.0
    %427 = vadd.xlane.f32.xlu0 %v426
    %v428 = vpop.xlane.xlu0 %427
    %v429 = vsel %vm99, %v407, 0.0
    %430 = vadd.xlane.f32.xlu0 %v429
    %v431 = vpop.xlane.xlu0 %430
    %v432 = vsel %vm99, %v408, 0.0
    %433 = vadd.xlane.f32.xlu0 %v432
    %v434 = vpop.xlane.xlu0 %433
    %v435 = vsel %vm99, %v409, 0.0
    %436 = vadd.xlane.f32.xlu0 %v435
    %v437 = vpop.xlane.xlu0 %436
    %v438 = vsel %vm99, %v410, 0.0
    %439 = vadd.xlane.f32.xlu0 %v438
    %v440 = vpop.xlane.xlu0 %439
    %v441 = vsel %vm99, %v411, 0.0
    %442 = vadd.xlane.f32.xlu0 %v441
    %v443 = vpop.xlane.xlu0 %442
    %v444 = vsel %vm99, %v412, 0.0
    %445 = vadd.xlane.f32.xlu0 %v444
    %v446 = vpop.xlane.xlu0 %445
    %v447 = vsel %vm99, %v413, 0.0
    %448 = vadd.xlane.f32.xlu0 %v447
    %v449 = vpop.xlane.xlu0 %448
    %v450 = vsel %vm99, %v414, 0.0
    %451 = vadd.xlane.f32.xlu0 %v450
    %v452 = vpop.xlane.xlu0 %451
    %v453 = vsel %vm99, %v415, 0.0
    %454 = vadd.xlane.f32.xlu0 %v453
    %v455 = vpop.xlane.xlu0 %454
    %v456 = vsel %vm99, %v416, 0.0
    %457 = vadd.xlane.f32.xlu0 %v456
    %v458 = vpop.xlane.xlu0 %457
    %v459 = vsel %vm99, %v417, 0.0
    %460 = vadd.xlane.f32.xlu0 %v459
    %v461 = vpop.xlane.xlu0 %460
    %v462 = vsel %vm99, %v418, 0.0
    %463 = vadd.xlane.f32.xlu0 %v462
    %v464 = vpop.xlane.xlu0 %463
    %v465 = vsel %vm99, %v419, 0.0
    %466 = vadd.xlane.f32.xlu0 %v465
    %v467 = vpop.xlane.xlu0 %466
    %v468 = vadd.s32 %v60, 8
    %v469 = vadd.s32 %v60, 16
    %v470 = vadd.s32 %v60, 24
    %v471 = vadd.s32 %v60, 32
    %v472 = vadd.s32 %v60, 40
    %v473 = vadd.s32 %v60, 48
    %v474 = vadd.s32 %v60, 56
    %v475 = vadd.s32 %v60, 64
    %v476 = vadd.s32 %v60, 72
    %v477 = vadd.s32 %v60, 80
    %v478 = vadd.s32 %v60, 88
    %v479 = vadd.s32 %v60, 96
    %v480 = vadd.s32 %v60, 104
    %v481 = vadd.s32 %v60, 112
    %v482 = vadd.s32 %v60, 120
    %v483 = vadd.s32 %v65, %v60
    %v484 = vadd.s32 %v65, %v468
    %v485 = vadd.s32 %v65, %v469
    %v486 = vadd.s32 %v65, %v470
    %v487 = vadd.s32 %v65, %v471
    %v488 = vadd.s32 %v65, %v472
    %v489 = vadd.s32 %v65, %v473
    %v490 = vadd.s32 %v65, %v474
    %v491 = vadd.s32 %v65, %v475
    %v492 = vadd.s32 %v65, %v476
    %v493 = vadd.s32 %v65, %v477
    %v494 = vadd.s32 %v65, %v478
    %v495 = vadd.s32 %v65, %v479
    %v496 = vadd.s32 %v65, %v480
    %v497 = vadd.s32 %v65, %v481
    %v498 = vadd.s32 %v65, %v482
    %vm499 = vcmp.lt.s32.totalorder %v483, 16
    %vm500 = vcmp.lt.s32.totalorder %v484, 16
    %vm501 = vcmp.lt.s32.totalorder %v485, 16
    %vm502 = vcmp.lt.s32.totalorder %v486, 16
    %vm503 = vcmp.lt.s32.totalorder %v487, 16
    %vm504 = vcmp.lt.s32.totalorder %v488, 16
    %vm505 = vcmp.lt.s32.totalorder %v489, 16
    %vm506 = vcmp.lt.s32.totalorder %v490, 16
    %vm507 = vcmp.lt.s32.totalorder %v491, 16
    %vm508 = vcmp.lt.s32.totalorder %v492, 16
    %vm509 = vcmp.lt.s32.totalorder %v493, 16
    %vm510 = vcmp.lt.s32.totalorder %v494, 16
    %vm511 = vcmp.lt.s32.totalorder %v495, 16
    %vm512 = vcmp.lt.s32.totalorder %v496, 16
    %vm513 = vcmp.lt.s32.totalorder %v497, 16
    %vm514 = vcmp.lt.s32.totalorder %v498, 16
    %v515 = vsub.f32 %v276, %v422
    %v516 = vsub.f32 %v277, %v425
    %v517 = vsub.f32 %v278, %v428
    %v518 = vsub.f32 %v279, %v431
    %v519 = vsub.f32 %v280, %v434
    %v520 = vsub.f32 %v281, %v437
    %v521 = vsub.f32 %v282, %v440
    %v522 = vsub.f32 %v283, %v443
    %v523 = vsub.f32 %v284, %v446
    %v524 = vsub.f32 %v285, %v449
    %v525 = vsub.f32 %v286, %v452
    %v526 = vsub.f32 %v287, %v455
    %v527 = vsub.f32 %v288, %v458
    %v528 = vsub.f32 %v289, %v461
    %v529 = vsub.f32 %v290, %v464
    %v530 = vsub.f32 %v291, %v467
    %v531 = vsel %vm499, %v515, 0.0
    %v532 = vsel %vm500, %v516, 0.0
    %v533 = vsel %vm501, %v517, 0.0
    %v534 = vsel %vm502, %v518, 0.0
    %v535 = vsel %vm503, %v519, 0.0
    %v536 = vsel %vm504, %v520, 0.0
    %v537 = vsel %vm505, %v521, 0.0
    %v538 = vsel %vm506, %v522, 0.0
    %v539 = vsel %vm507, %v523, 0.0
    %v540 = vsel %vm508, %v524, 0.0
    %v541 = vsel %vm509, %v525, 0.0
    %v542 = vsel %vm510, %v526, 0.0
    %v543 = vsel %vm511, %v527, 0.0
    %v544 = vsel %vm512, %v528, 0.0
    %v545 = vsel %vm513, %v529, 0.0
    %v546 = vsel %vm514, %v530, 0.0
    %vm547 = vcmask 7168
    %v548 = vsel %vm547, %v531, 0.0
    %v549 = vsel %vm547, %v532, 0.0
    %v550 = vadd.f32 %v548, %v549
    %v551 = vsel %vm547, %v533, 0.0
    %v552 = vadd.f32 %v550, %v551
    %v553 = vsel %vm547, %v534, 0.0
    %v554 = vadd.f32 %v552, %v553
    %v555 = vsel %vm547, %v535, 0.0
    %v556 = vadd.f32 %v554, %v555
    %v557 = vsel %vm547, %v536, 0.0
    %v558 = vadd.f32 %v556, %v557
    %v559 = vsel %vm547, %v537, 0.0
    %v560 = vadd.f32 %v558, %v559
    %v561 = vsel %vm547, %v538, 0.0
    %v562 = vadd.f32 %v560, %v561
    %v563 = vsel %vm547, %v539, 0.0
    %v564 = vadd.f32 %v562, %v563
    %v565 = vsel %vm547, %v540, 0.0
    %v566 = vadd.f32 %v564, %v565
    %v567 = vsel %vm547, %v541, 0.0
    %v568 = vadd.f32 %v566, %v567
    %v569 = vsel %vm547, %v542, 0.0
    %v570 = vadd.f32 %v568, %v569
    %v571 = vsel %vm547, %v543, 0.0
    %v572 = vadd.f32 %v570, %v571
    %v573 = vsel %vm547, %v544, 0.0
    %v574 = vadd.f32 %v572, %v573
    %v575 = vsel %vm547, %v545, 0.0
    %v576 = vadd.f32 %v574, %v575
    %v577 = vsel %vm547, %v546, 0.0
    %v578 = vadd.f32 %v576, %v577
    %579 = vadd.xlane.f32.xlu0 %v578
    %v580 = vpop.xlane.xlu0 %579
    %v581 = vrot.slane %v580, 4
    %v582 = vadd.f32 %v580, %v581
    %v583 = vrot.slane %v582, 2
    %v584 = vadd.f32 %v582, %v583
    %v585 = vrot.slane %v584, 1
    %v586 = vadd.f32 %v584, %v585
    %s587 = vtos %v586
    %vm588 = vcmp.eq.s32.totalorder %v60, 0
    %vm589 = vcmp.eq.s32.totalorder %v63, 0
    %vm590 = vmand %vm588, %vm589
    %v591 = vstv %s39
    %v592 = vsel %vm590, %v591, 0.0
    %vm593 = vcmp.eq.s32.totalorder %v63, 1
    %vm594 = vmand %vm588, %vm593
    %v595 = vstv %s82
    %v596 = vsel %vm594, %v595, 0.0
    %v597 = vadd.f32 %v592, %v596
    %vm598 = vcmp.eq.s32.totalorder %v63, 2
    %vm599 = vmand %vm588, %vm598
    %v600 = vstv %s587
    %v601 = vsel %vm599, %v600, 0.0
    %v602 = vadd.f32 %v597, %v601
    %603 = vst [vmem:[#allocation2] sm:$0xff] %v602
    // Predicated region
    $region26: #{tpu_custom_call.1} parent=1 // pred_check
      _
    $region27: #{tpu_custom_call.1} parent=1 // pred_check_branch
      %605 = sbr.rel (0) target = $region29
    $region28: #{tpu_custom_call.1} parent=1 // pred_region
      %s607 = ssub.s32 128, 128
      %608 = vsyncadd [#allocation3], %s607
      %s610 = sshll.u32 [#allocation2], 4
      %s611 = int_to_ptr.vmem [resolvable:$true] %s610
      %613 = dma.vmem_to_hbm [thread:$0]  %s611, 128, %s6, [#allocation3]
    $region29: #{tpu_custom_call.1} parent=1 // pred_fallthru
      _
    // Predicated region
    $region30: #{tpu_custom_call.1} parent=1 // pred_check
      _
    $region31: #{tpu_custom_call.1} parent=1 // pred_check_branch
      %615 = sbr.rel (0) target = $region33
    $region32: #{tpu_custom_call.1} parent=1 // pred_region
      %616 = dma.done [#allocation3], 128
    $region33: #{tpu_custom_call.1} parent=1 // pred_fallthru
      _
    %617 = vsyncpa [#allocation3], 1

</llo_original>
